<compile_context>
chip_gen: v7x
topology: tpu7x:2x2x1
jax: 0.10.0
libtpu: 0.0.40
codegen_flags: <defaults>
</compile_context>

<pallas_src>
import functools

import jax
import jax.numpy as jnp
from jax.experimental import pallas as pl
from jax.experimental.pallas import tpu as pltpu

_LANE = 128
_SUBLANE = 8
# Per-pipeline-buffer budget for the dominant context_x stream, counted at its
# lane-PADDED VMEM size (minor dim d < 128 pads up to 128 lanes -> up to 4x).
_CX_BUF_BUDGET = 8 * 1024 * 1024


def _round_up(x: int, m: int) -> int:
    return ((x + m - 1) // m) * m


def linear_transformer_kernel(cx_ref, cy_ref, tx_ref, w_ref, out_ref, acc_ref,
                              *, inv_n):
    k = pl.program_id(1)

    @pl.when(k == 0)
    def _init():
        acc_ref[...] = jnp.zeros_like(acc_ref)

    # VPU path: broadcast-multiply + in-block reduce over the context axis.
    # Exact f32 math, no M=1 MXU matmuls; the 1/N scale is folded into the
    # +-1 sign so the accumulator directly holds the mean term.
    cx = cx_ref[...].astype(jnp.float32)                     # (TB, TN, d)
    cy = cy_ref[...].astype(jnp.float32)                     # (TB, TN)
    sig = (2.0 * cy - 1.0) * inv_n                           # (TB, TN)
    acc_ref[...] += jnp.sum(sig[..., None] * cx, axis=1)     # (TB, d)

    @pl.when(k == pl.num_programs(1) - 1)
    def _finalize():
        ctx_term = acc_ref[...]                                        # (TB, d)
        transformed = jnp.dot(ctx_term, w_ref[...],
                              preferred_element_type=jnp.float32)      # (TB, d)
        logits = jnp.sum(transformed * tx_ref[...], axis=1)            # (TB,)
        # Lane-dense store: B sits on the 128-lane axis.
        out_ref[...] = logits[None, :].astype(out_ref.dtype)           # (1, TB)


def linear_transformer_forward(context_x, context_y, target_x, W,
                               *, cast_to_bf16=None):
    B, N, d = context_x.shape
    inv_n = 1.0 / N

    # Cast the HBM-dominant streams to bf16 at scale (kernel widens to f32 and
    # accumulates in f32).  Toy shapes keep exact f32.
    if cast_to_bf16 is None:
        cast_to_bf16 = (B * N * d) >= (1 << 22)
    ctx_dtype = jnp.bfloat16 if cast_to_bf16 else context_x.dtype
    itemsize = jnp.dtype(ctx_dtype).itemsize

    # ---- tile selection (lane-padding aware) ----
    if B >= _LANE:
        # Lane-dense output tiles; >= 2 B-tiles whenever B >= 256 so the
        # "parallel" axis shards across v7x's two TensorCores.
        block_b = _LANE
        B_pad = _round_up(B, block_b)
    else:
        block_b = B                       # single full-dim tile ((8,128) exemption)
        B_pad = B

    d_pad = _round_up(d, _LANE)
    bn_cap = max(_SUBLANE, _CX_BUF_BUDGET // (block_b * d_pad * itemsize))
    if N <= bn_cap:
        block_n = N                       # single N tile (full-dim exemption)
        N_pad = N
    else:
        block_n = max(_LANE, (bn_cap // _LANE) * _LANE)   # lane-aligned for cy blocks
        N_pad = _round_up(N, block_n)

    # ---- pad inputs so tiles divide exactly (zero rows contribute 0 to the sum) ----
    cx, cy, tx = context_x, context_y, target_x
    if B_pad != B or N_pad != N:
        cx = jnp.pad(cx, ((0, B_pad - B), (0, N_pad - N), (0, 0)))
        cy = jnp.pad(cy, ((0, B_pad - B), (0, N_pad - N)))
        tx = jnp.pad(tx, ((0, B_pad - B), (0, 0)))
    cx = cx.astype(ctx_dtype)
    cy = cy.astype(ctx_dtype)
    tx = tx.astype(jnp.float32)
    W = W.astype(jnp.float32)

    grid = (B_pad // block_b, N_pad // block_n)

    # ---- explicit VMEM budget (lane-padded, double-buffered, incl. mul temp) ----
    cx_buf = block_b * _round_up(block_n, _SUBLANE) * d_pad * itemsize
    cy_buf = _round_up(block_b, _SUBLANE) * _round_up(block_n, _LANE) * itemsize
    tx_buf = _round_up(block_b, _SUBLANE) * d_pad * 4
    w_buf = _round_up(d, _SUBLANE) * d_pad * 4
    out_buf = _SUBLANE * _round_up(block_b, _LANE) * 4
    acc_buf = block_b * d_pad * 4
    mul_tmp = block_b * _round_up(block_n, _SUBLANE) * d_pad * 4    # f32 product temp
    est = (2 * (cx_buf + cy_buf + tx_buf + w_buf)
           + out_buf + acc_buf + mul_tmp + (4 << 20))
    vmem_limit = int(min(32 << 20, max(16 << 20, est)))

    flops = 2 * B_pad * N_pad * d + 2 * B_pad * d * d + 2 * B_pad * d
    bytes_accessed = (itemsize * (B_pad * N_pad * d + B_pad * N_pad)
                      + 4 * (B_pad * d + d * d + B_pad))

    out = pl.pallas_call(
        functools.partial(linear_transformer_kernel, inv_n=inv_n),
        out_shape=jax.ShapeDtypeStruct((1, B_pad), jnp.float32),
        grid_spec=pltpu.PrefetchScalarGridSpec(
            num_scalar_prefetch=0,
            grid=grid,
            in_specs=[
                pl.BlockSpec((block_b, block_n, d), lambda i, k: (i, k, 0)),
                pl.BlockSpec((block_b, block_n), lambda i, k: (i, k)),
                pl.BlockSpec((block_b, d), lambda i, k: (i, 0)),
                pl.BlockSpec((d, d), lambda i, k: (0, 0)),
            ],
            out_specs=pl.BlockSpec((1, block_b), lambda i, k: (0, i)),
            scratch_shapes=[pltpu.VMEM((block_b, d), jnp.float32)],
        ),
        compiler_params=pltpu.CompilerParams(
            dimension_semantics=("parallel", "arbitrary"),
            vmem_limit_bytes=vmem_limit),
        cost_estimate=pl.CostEstimate(
            flops=flops, transcendentals=0, bytes_accessed=bytes_accessed),
    )(cx, cy, tx, W)
    return out[0, :B]   # (B,)


def reference_forward(context_x, context_y, target_x, W):
    N = context_x.shape[1]
    sig = 2.0 * context_y - 1.0
    ctx_term = jnp.sum(sig[..., None] * context_x, axis=1) / N
    transformed = ctx_term @ W
    return jnp.sum(transformed * target_x, axis=1)


if __name__ == "__main__":
    B, N, d = 2, 8, 32

    key = jax.random.PRNGKey(0)
    k_cx, k_cy, k_tx, k_w = jax.random.split(key, 4)

    context_x = jax.random.normal(k_cx, (B, N, d), dtype=jnp.float32)
    context_y = jax.random.bernoulli(k_cy, 0.5, (B, N)).astype(jnp.float32)
    target_x = jax.random.normal(k_tx, (B, d), dtype=jnp.float32)
    # Module inits W = zeros(d, d); use a deterministic random W so the kernel's
    # compute path is actually exercised (zeros would give all-zero logits).
    W = jax.random.normal(k_w, (d, d), dtype=jnp.float32) * 0.1

    out = jax.block_until_ready(
        linear_transformer_forward(context_x, context_y, target_x, W))
    ref = reference_forward(context_x, context_y, target_x, W)

    assert out.shape == (B,)
    assert jnp.allclose(out, ref, atol=1e-5, rtol=1e-5), (out, ref)
    print("KERNEL_OK")
</pallas_src>

<mosaic_0001>
module attributes {stable_mosaic.version = 11 : i64} {
  func.func @linear_transformer_kernel(%arg0: i32, %arg1: i32, %arg2: memref<2x8x32xf32, #tpu.memory_space<vmem>>, %arg3: memref<2x8xf32, #tpu.memory_space<vmem>>, %arg4: memref<2x32xf32, #tpu.memory_space<vmem>>, %arg5: memref<32x32xf32, #tpu.memory_space<vmem>>, %arg6: memref<1x2xf32, #tpu.memory_space<vmem>>, %arg7: memref<2x32xf32, #tpu.memory_space<vmem>>) attributes {dimension_semantics = [#tpu.dimension_semantics<parallel>, #tpu.dimension_semantics<arbitrary>], iteration_bounds = array<i64: 1, 1>, scalar_prefetch = 0 : i64, scratch_operands = 1 : i64, tpu.core_type = #tpu.core_type<tc>, window_params = [{transform_indices = @transform_0, window_bounds = array<i64: 2, 8, 32>}, {transform_indices = @transform_1, window_bounds = array<i64: 2, 8>}, {transform_indices = @transform_2, window_bounds = array<i64: 2, 32>}, {pipeline_mode = #tpu.pipeline_mode<synchronous>, transform_indices = @transform_3, window_bounds = array<i64: 32, 32>}, {transform_indices = @transform_4, window_bounds = array<i64: 1, 2>}]} {
    %c0_i32 = arith.constant 0 : i32
    %0 = arith.cmpi eq, %arg1, %c0_i32 : i32
    %1 = arith.extui %0 : i1 to i32
    %c0_i32_0 = arith.constant 0 : i32
    %2 = arith.cmpi ne, %1, %c0_i32_0 : i32
    scf.if %2 {
      %cst_14 = arith.constant 0.000000e+00 : f32
      %21 = vector.broadcast %cst_14 : f32 to vector<2x32xf32>
      %c0_15 = arith.constant 0 : index
      %c0_16 = arith.constant 0 : index
      %22 = vector.load %arg7[%c0_15, %c0_16] : memref<2x32xf32, #tpu.memory_space<vmem>>, vector<2x32xf32>
      tpu.vector_store %arg7[%c0_15, %c0_16], %21 {strides = array<i32>} : memref<2x32xf32, #tpu.memory_space<vmem>>, vector<2x32xf32>,
    } else {
    }
    %c0 = arith.constant 0 : index
    %c0_1 = arith.constant 0 : index
    %c0_2 = arith.constant 0 : index
    %3 = vector.load %arg2[%c0, %c0_1, %c0_2] : memref<2x8x32xf32, #tpu.memory_space<vmem>>, vector<2x8x32xf32>
    %c0_3 = arith.constant 0 : index
    %c0_4 = arith.constant 0 : index
    %4 = vector.load %arg3[%c0_3, %c0_4] : memref<2x8xf32, #tpu.memory_space<vmem>>, vector<2x8xf32>
    %cst = arith.constant 2.000000e+00 : f32
    %5 = vector.broadcast %cst : f32 to vector<2x8xf32>
    %6 = arith.mulf %5, %4 : vector<2x8xf32>
    %cst_5 = arith.constant 1.000000e+00 : f32
    %7 = vector.broadcast %cst_5 : f32 to vector<2x8xf32>
    %8 = arith.subf %6, %7 : vector<2x8xf32>
    %cst_6 = arith.constant 1.250000e-01 : f32
    %9 = vector.broadcast %cst_6 : f32 to vector<2x8xf32>
    %10 = arith.mulf %8, %9 : vector<2x8xf32>
    %c0_7 = arith.constant 0 : index
    %c0_8 = arith.constant 0 : index
    %11 = vector.load %arg7[%c0_7, %c0_8] : memref<2x32xf32, #tpu.memory_space<vmem>>, vector<2x32xf32>
    %12 = vector.shape_cast %10 : vector<2x8xf32> to vector<2x8x1xf32>
    %13 = vector.broadcast %12 : vector<2x8x1xf32> to vector<2x8x32xf32>
    %14 = arith.mulf %13, %3 : vector<2x8x32xf32>
    %cst_9 = arith.constant dense<0.000000e+00> : vector<2x32xf32>
    %15 = vector.multi_reduction <add>, %14, %cst_9 [1] : vector<2x8x32xf32> to vector<2x32xf32>
    %16 = arith.addf %11, %15 : vector<2x32xf32>
    %c0_10 = arith.constant 0 : index
    %c0_11 = arith.constant 0 : index
    %17 = vector.load %arg7[%c0_10, %c0_11] : memref<2x32xf32, #tpu.memory_space<vmem>>, vector<2x32xf32>
    tpu.vector_store %arg7[%c0_10, %c0_11], %16 {strides = array<i32>} : memref<2x32xf32, #tpu.memory_space<vmem>>, vector<2x32xf32>,
    %c0_i32_12 = arith.constant 0 : i32
    %18 = arith.cmpi eq, %arg1, %c0_i32_12 : i32
    %19 = arith.extui %18 : i1 to i32
    %c0_i32_13 = arith.constant 0 : i32
    %20 = arith.cmpi ne, %19, %c0_i32_13 : i32
    scf.if %20 {
      %c0_14 = arith.constant 0 : index
      %c0_15 = arith.constant 0 : index
      %21 = vector.load %arg7[%c0_14, %c0_15] : memref<2x32xf32, #tpu.memory_space<vmem>>, vector<2x32xf32>
      %c0_16 = arith.constant 0 : index
      %c0_17 = arith.constant 0 : index
      %22 = vector.load %arg5[%c0_16, %c0_17] : memref<32x32xf32, #tpu.memory_space<vmem>>, vector<32x32xf32>
      %cst_18 = arith.constant dense<0.000000e+00> : vector<2x32xf32>
      %23 = tpu.matmul %21, %22, %cst_18 {dimension_numbers = #tpu.dot_dimension_numbers<[1], [0], [0], [1], [0, 0, 1, 1], [], []>} : vector<2x32xf32>, vector<32x32xf32>, vector<2x32xf32> -> vector<2x32xf32>
      %c0_19 = arith.constant 0 : index
      %c0_20 = arith.constant 0 : index
      %24 = vector.load %arg4[%c0_19, %c0_20] : memref<2x32xf32, #tpu.memory_space<vmem>>, vector<2x32xf32>
      %25 = arith.mulf %23, %24 : vector<2x32xf32>
      %cst_21 = arith.constant dense<0.000000e+00> : vector<2xf32>
      %26 = vector.multi_reduction <add>, %25, %cst_21 [1] : vector<2x32xf32> to vector<2xf32>
      %27 = vector.shape_cast %26 : vector<2xf32> to vector<1x2xf32>
      %c0_22 = arith.constant 0 : index
      %c0_23 = arith.constant 0 : index
      %28 = vector.load %arg6[%c0_22, %c0_23] : memref<1x2xf32, #tpu.memory_space<vmem>>, vector<1x2xf32>
      tpu.vector_store %arg6[%c0_22, %c0_23], %27 {strides = array<i32>} : memref<1x2xf32, #tpu.memory_space<vmem>>, vector<1x2xf32>,
    } else {
    }
    return
  }
  func.func @transform_0(%arg0: i32, %arg1: i32) -> (i32, i32, i32) {
    %c0_i32 = arith.constant 0 : i32
    %c0_i32_0 = arith.constant 0 : i32
    return %arg0, %arg1, %c0_i32 : i32, i32, i32
  }
  func.func @transform_1(%arg0: i32, %arg1: i32) -> (i32, i32) {
    %c0_i32 = arith.constant 0 : i32
    return %arg0, %arg1 : i32, i32
  }
  func.func @transform_2(%arg0: i32, %arg1: i32) -> (i32, i32) {
    %c0_i32 = arith.constant 0 : i32
    %c0_i32_0 = arith.constant 0 : i32
    return %arg0, %c0_i32 : i32, i32
  }
  func.func @transform_3(%arg0: i32, %arg1: i32) -> (i32, i32) {
    %c0_i32 = arith.constant 0 : i32
    %c0_i32_0 = arith.constant 0 : i32
    %c0_i32_1 = arith.constant 0 : i32
    return %c0_i32, %c0_i32_0 : i32, i32
  }
  func.func @transform_4(%arg0: i32, %arg1: i32) -> (i32, i32) {
    %c0_i32 = arith.constant 0 : i32
    %c0_i32_0 = arith.constant 0 : i32
    return %c0_i32, %arg0 : i32, i32
  }
}

</mosaic_0001>

<llo_original>
// kernel: tpu_custom_call.1
$region0: #{tpu_custom_call.1}
  #allocation0 [shape = 'u32[]', space=smem, size = 0x4, offset = 0x4, fixed_abs, tag = 'smem constant byte address 0x4 - core index']
  #allocation1 [shape = 'u32[144,128]{1,0:T(1,128)}', space=vmem, size = 0x12000, scoped, tag = 'internal scratch']
  #allocation2 [shape = 'f32[2,32]{1,0:T(2,128)}', space=vmem, size = 0x400, scoped, tag = 'scratch operand']
  %s0 = inlined_call_operand.hbm [shape: f32[2,8,32], index: 0, kind: input, shape index: {}]
  %s1 = inlined_call_operand.vmem [shape: f32[2,8], index: 1, kind: input, shape index: {}]
  %s2 = inlined_call_operand.vmem [shape: f32[2,32], index: 2, kind: input, shape index: {}]
  %s3 = inlined_call_operand.hbm [shape: f32[32,32], index: 3, kind: input, shape index: {}]
  %s4 = inlined_call_operand.hbm [shape: f32[1,2], index: 4, kind: output, shape index: {}]
  %s5 = sld [smem:[#allocation0]]
  $region42: #{tpu_custom_call.1} parent=0
    _
  %s7 = ssub.s32 1, %s5
  %s8 = scalar_select 0, %s7, %s5
  $region1: #{tpu_custom_call.1} parent=0
    #allocation3 [shape = 'u8[8192]{0}', space=vmem, size = 0x2000, scoped, tag = 'input window, operand 0, single buffered']
    #allocation4 [shape = 's32[1]{0}', space=sflag, size = 0x4, scoped, tag = 'scoped memory for tpu_custom_call.1']
    #allocation5 [shape = 's32[1]{0}', space=sflag, size = 0x4, scoped, tag = 'scoped memory for tpu_custom_call.1']
    #allocation6 [shape = 'u8[16384]{0}', space=vmem, size = 0x4000, scoped, tag = 'input window, operand 3, single buffered']
    #allocation7 [shape = 's32[1]{0}', space=sflag, size = 0x4, scoped, tag = 'scoped memory for tpu_custom_call.1']
    #allocation8 [shape = 'u8[512]{0}', space=vmem, size = 0x400, scoped, tag = 'output window, operand 0, single buffered']
    %9 = vsyncpa [#allocation4], 0
    %10 = vsyncpa [#allocation7], 0
    %11 = vsyncpa [#allocation5], 0
    // Predicated region
    $region2: #{tpu_custom_call.1} parent=1 // pred_check
      _
    $region3: #{tpu_custom_call.1} parent=1 // pred_check_branch
      %13 = sbr.rel (0) target = $region5
    $region4: #{tpu_custom_call.1} parent=1 // pred_region
      %s15 = ssub.s32 256, 256
      %16 = vsyncadd [#allocation4], %s15
      %s17 = sshll.u32 [#allocation3], 4
      %s18 = int_to_ptr.vmem [resolvable:$true] %s17
      %23 = dma.hbm_to_vmem [thread:$0]  %s0, 256, %s18, [#allocation4], 128, 128, 8
    $region5: #{tpu_custom_call.1} parent=1 // pred_fallthru
      _
    // Predicated region
    $region6: #{tpu_custom_call.1} parent=1 // pred_check
      _
    $region7: #{tpu_custom_call.1} parent=1 // pred_check_branch
      %25 = sbr.rel (0) target = $region9
    $region8: #{tpu_custom_call.1} parent=1 // pred_region
      _
    $region9: #{tpu_custom_call.1} parent=1 // pred_fallthru
      _
    // Predicated region
    $region10: #{tpu_custom_call.1} parent=1 // pred_check
      _
    $region11: #{tpu_custom_call.1} parent=1 // pred_check_branch
      %27 = sbr.rel (0) target = $region13
    $region12: #{tpu_custom_call.1} parent=1 // pred_region
      _
    $region13: #{tpu_custom_call.1} parent=1 // pred_fallthru
      _
    // Predicated region
    $region14: #{tpu_custom_call.1} parent=1 // pred_check
      _
    $region15: #{tpu_custom_call.1} parent=1 // pred_check_branch
      %29 = sbr.rel (0) target = $region17
    $region16: #{tpu_custom_call.1} parent=1 // pred_region
      %s31 = ssub.s32 512, 512
      %32 = vsyncadd [#allocation7], %s31
      %s33 = sshll.u32 [#allocation6], 4
      %s34 = int_to_ptr.vmem [resolvable:$true] %s33
      %39 = dma.hbm_to_vmem [thread:$0]  %s3, 512, %s34, [#allocation7], 128, 128, 8
    $region17: #{tpu_custom_call.1} parent=1 // pred_fallthru
      _
    // Predicated region
    $region18: #{tpu_custom_call.1} parent=1 // pred_check
      _
    $region19: #{tpu_custom_call.1} parent=1 // pred_check_branch
      %41 = sbr.rel (0) target = $region21
    $region20: #{tpu_custom_call.1} parent=1 // pred_region
      %42 = dma.done [#allocation4], 256
    $region21: #{tpu_custom_call.1} parent=1 // pred_fallthru
      _
    // Predicated region
    $region22: #{tpu_custom_call.1} parent=1 // pred_check
      _
    $region23: #{tpu_custom_call.1} parent=1 // pred_check_branch
      %44 = sbr.rel (0) target = $region25
    $region24: #{tpu_custom_call.1} parent=1 // pred_region
      %45 = dma.done [#allocation7], 512
    $region25: #{tpu_custom_call.1} parent=1 // pred_fallthru
      _
    %p46 = scmp.eq.s32.totalorder 0, 0
    // Predicated region
    $region26: #{tpu_custom_call.1} parent=1 // pred_check
      %p47 = pneg %p46
    $region27: #{tpu_custom_call.1} parent=1 // pred_check_branch
      %49 = sbr.rel (%p47) target = $region29
    $region28: #{tpu_custom_call.1} parent=1 // pred_region
      %vm50 = vcmask 254976
      %51 = vst.msk [vmem:[#allocation2] sm:$0x3] %vm50, 0.0
    $region29: #{tpu_custom_call.1} parent=1 // pred_fallthru
      _
    %v52 = vld [vmem:[#allocation3] sm:$0xff]
    %v53 = vld [vmem:[#allocation3 + $0x8] sm:$0xff]
    %v54 = vld [vmem:[%s1] sm:$0x3]
    %v55 = vmul.f32 %v54, 2.0
    %v56 = vsub.f32 %v55, 1.0
    %v57 = vmul.f32 %v56, 0.125
    %v58 = vld [vmem:[#allocation2] sm:$0x3]
    %v59 = vlaneseq
    %v60 = vshrl.u32 %v59, 7
    %v61 = vsub.s32 0, %v60
    %v62 = vrot.slane %v57, %v61
    %64 = vbcast.lane.b32.xlu0 %v62, 256
    %v65 = vpop.permute.xlu0 %64
    %v66 = vlaneseq
    %v67 = vshrl.u32 %v66, 7
    %v68 = vsub.s32 1, %v67
    %v69 = vrot.slane %v57, %v68
    %71 = vbcast.lane.b32.xlu0 %v69, 256
    %v72 = vpop.permute.xlu0 %71
    %v73 = vmul.f32 %v65, %v52
    %v74 = vmul.f32 %v72, %v53
    %vm75 = vcmask 261120
    %v76 = vsel %vm75, %v73, 0.0
    %v77 = vrot.slane %v76, 4
    %v78 = vadd.f32 %v76, %v77
    %v79 = vrot.slane %v78, 2
    %v80 = vadd.f32 %v78, %v79
    %v81 = vrot.slane %v80, 1
    %v82 = vadd.f32 %v80, %v81
    %v83 = vsel %vm75, %v74, 0.0
    %v84 = vrot.slane %v83, 4
    %v85 = vadd.f32 %v83, %v84
    %v86 = vrot.slane %v85, 2
    %v87 = vadd.f32 %v85, %v86
    %v88 = vrot.slane %v87, 1
    %v89 = vadd.f32 %v87, %v88
    %vm92 = vcmask 1041409
    %v93 = vsel %vm92, %v89, %v82
    %v95 = vadd.f32 %v58, %v93
    %vm96 = vcmask 254976
    %97 = vst.msk [vmem:[#allocation2] sm:$0x3] %vm96, %v95
    // Predicated region
    $region30: #{tpu_custom_call.1} parent=1 // pred_check
      %p98 = pneg %p46
    $region31: #{tpu_custom_call.1} parent=1 // pred_check_branch
      %100 = sbr.rel (%p98) target = $region33
    $region32: #{tpu_custom_call.1} parent=1 // pred_region
      %v101 = vld [vmem:[#allocation2] sm:$0x3]
      %v102 = vld [vmem:[#allocation6] sm:$0xff]
      %v103 = vld [vmem:[#allocation6 + $0x8] sm:$0xff]
      %v104 = vld [vmem:[#allocation6 + $0x10] sm:$0xff]
      %v105 = vld [vmem:[#allocation6 + $0x18] sm:$0xff]
      %v107 = vsel %vm75, %v101, 0
      %109 = vmatprep.subr.mxu0 0.0
      %110 = vmatpush1.msra.mxu0 %v102
      %111 = vmatprep.subr.mxu0 0.0
      %112 = vmatpush1.msra.mxu0 %v103
      %113 = vmatprep.subr.mxu0 0.0
      %114 = vmatpush1.msra.mxu0 %v104
      %115 = vmatprep.subr.mxu0 0.0
      %116 = vmatpush1.msra.mxu0 %v105
      %117 = vmatprep.subr.mxu0 0.0
      %118 = vmatpush1.msra.mxu0 0.0
      %119 = vmatprep.subr.mxu0 0.0
      %120 = vmatpush1.msra.mxu0 0.0
      %121 = vmatprep.subr.mxu0 0.0
      %122 = vmatpush1.msra.mxu0 0.0
      %123 = vmatprep.subr.mxu0 0.0
      %124 = vmatpush1.msra.mxu0 0.0
      %125 = vmatprep.subr.mxu0 0.0
      %126 = vmatpush1.msra.mxu0 0.0
      %127 = vmatprep.subr.mxu0 0.0
      %128 = vmatpush1.msra.mxu0 0.0
      %129 = vmatprep.subr.mxu0 0.0
      %130 = vmatpush1.msra.mxu0 0.0
      %131 = vmatprep.subr.mxu0 0.0
      %132 = vmatpush1.msra.mxu0 0.0
      %133 = vmatprep.subr.mxu0 0.0
      %134 = vmatpush1.msra.mxu0 0.0
      %135 = vmatprep.subr.mxu0 0.0
      %136 = vmatpush1.msra.mxu0 0.0
      %137 = vmatprep.subr.mxu0 0.0
      %138 = vmatpush1.msra.mxu0 0.0
      %139 = vmatprep.subr.mxu0 0.0
      %140 = vmatpush1.msra.mxu0 0.0
      %141 = vmatprep.subr.mxu0 0.0
      %142 = vmatpush1.msra.mxu0 0.0
      %143 = vmatprep.subr.mxu0 0.0
      %144 = vmatpush1.msra.mxu0 0.0
      %145 = vmatprep.subr.mxu0 0.0
      %146 = vmatpush1.msra.mxu0 0.0
      %147 = vmatprep.subr.mxu0 0.0
      %148 = vmatpush1.msra.mxu0 0.0
      %149 = vmatprep.subr.mxu0 0.0
      %150 = vmatpush1.msra.mxu0 0.0
      %151 = vmatprep.subr.mxu0 0.0
      %152 = vmatpush1.msra.mxu0 0.0
      %153 = vmatprep.subr.mxu0 0.0
      %154 = vmatpush1.msra.mxu0 0.0
      %155 = vmatprep.subr.mxu0 0.0
      %156 = vmatpush1.msra.mxu0 0.0
      %157 = vmatprep.subr.mxu0 0.0
      %158 = vmatpush1.msra.mxu0 0.0
      %159 = vmatprep.subr.mxu0 0.0
      %160 = vmatpush1.msra.mxu0 0.0
      %161 = vmatprep.subr.mxu0 0.0
      %162 = vmatpush1.msra.mxu0 0.0
      %163 = vmatprep.subr.mxu0 0.0
      %164 = vmatpush1.msra.mxu0 0.0
      %165 = vmatprep.subr.mxu0 0.0
      %166 = vmatpush1.msra.mxu0 0.0
      %167 = vmatprep.subr.mxu0 0.0
      %168 = vmatpush1.msra.mxu0 0.0
      %169 = vmatprep.subr.mxu0 0.0
      %170 = vmatpush1.msra.mxu0 0.0
      %171 = vmatprep.subr.mxu0 0.0
      %172 = vmatpush1.msra.mxu0 0.0
      %173 = vmatprep.mubr.f32.mxu0 0.0
      %174 = vmatmul.mubr.f32.gmra.mrb[0].mxu0 %v107
      %v175 = vpop.f32.mrb[0].mxu0
      %v176 = vadd.f32 0.0, %v175
      %v177 = vpop.f32.mrb[0].mxu0
      %178 = vdwg.mxu0
      %v179 = vld [vmem:[%s2] sm:$0x3]
      %v180 = vmul.f32 %v176, %v179
      %v181 = vsel %vm96, %v180, 0.0
      %182 = vadd.xlane.f32.xlu0 %v181
      %v183 = vpop.xlane.xlu0 %182
      %v185 = vlaneseq
      %v186 = vand.u32 %v185, 127
      %v187 = vlaneseq
      %v188 = vshrl.u32 %v187, 7
      %v189 = vsub.s32 %v186, %v188
      %v190 = vrot.slane %v183, %v189
      %vm192 = vcmask 8192
      %193 = vst.msk [vmem:[#allocation8] sm:$0x1] %vm192, %v190
    $region33: #{tpu_custom_call.1} parent=1 // pred_fallthru
      _
    // Predicated region
    $region34: #{tpu_custom_call.1} parent=1 // pred_check
      _
    $region35: #{tpu_custom_call.1} parent=1 // pred_check_branch
      %195 = sbr.rel (0) target = $region37
    $region36: #{tpu_custom_call.1} parent=1 // pred_region
      %s197 = ssub.s32 16, 16
      %198 = vsyncadd [#allocation5], %s197
      %s200 = sshll.u32 [#allocation8], 4
      %s201 = int_to_ptr.vmem [resolvable:$true] %s200
      %203 = dma.vmem_to_hbm [thread:$0]  %s201, 16, %s4, [#allocation5]
    $region37: #{tpu_custom_call.1} parent=1 // pred_fallthru
      _
    // Predicated region
    $region38: #{tpu_custom_call.1} parent=1 // pred_check
      _
    $region39: #{tpu_custom_call.1} parent=1 // pred_check_branch
      %205 = sbr.rel (0) target = $region41
    $region40: #{tpu_custom_call.1} parent=1 // pred_region
      %206 = dma.done [#allocation5], 16
    $region41: #{tpu_custom_call.1} parent=1 // pred_fallthru
      _
    %207 = vsyncpa [#allocation4], 1
    %208 = vsyncpa [#allocation7], 1
    %209 = vsyncpa [#allocation5], 1

</llo_original>
